<compile_context>
chip_gen: v6e
topology: v6e:2x2x1
jax: 0.10.0
libtpu: 0.0.40
codegen_flags: <defaults>
</compile_context>

<pallas_src>
import functools
import math

import jax
import jax.numpy as jnp
from jax.experimental import pallas as pl
from jax.experimental.pallas import tpu as pltpu


def _dropsample_kernel(scale_ref, x_ref, o_ref):
    """scale_ref: (B,) f32 in SMEM; x_ref/o_ref: one (1, tr, 128) tile of sample b."""
    b = pl.program_id(0)
    s = scale_ref[b].astype(o_ref.dtype)  # 0.0 (dropped) or 1/(1-prob) (kept)
    o_ref[...] = x_ref[...] * s


def _sublane_align(itemsize: int) -> int:
    """Native sublane packing: 8 rows for f32, 16 for bf16, 32 for int8/fp8."""
    return max(8, 32 // itemsize)


def _default_max_tile_bytes() -> int:
    """Generation-aware tile cap; 4x tile (double-buffered in+out) must fit
    the scoped-VMEM default (v5e: 16 MiB, v6e/v7x: 32 MiB)."""
    try:
        kind = jax.devices()[0].device_kind.lower()
    except Exception:
        return 2 << 20
    if "v7" in kind:
        return 6 << 20   # 4 x 6 MiB = 24 MiB < 32 MiB scoped default
    if "v6" in kind:
        return 4 << 20   # 4 x 4 MiB = 16 MiB < 32 MiB scoped default
    return 2 << 20       # v5e / unknown: 4 x 2 MiB = 8 MiB < 16 MiB default


def _pick_row_tile(rows: int, itemsize: int, max_tile_bytes: int) -> int:
    """Row-tile for a (rows, 128) per-sample slab.

    Whole slab if it fits the budget (block dim == array dim is always legal);
    otherwise a fixed sublane-aligned tile - the grid uses cdiv and Pallas
    masks the ragged last block, so no divisor search is needed.
    """
    sub = _sublane_align(itemsize)
    budget_rows = max(sub, (max_tile_bytes // (128 * itemsize)) // sub * sub)
    if rows <= budget_rows:
        return rows
    return budget_rows


@functools.partial(
    jax.jit, static_argnames=("prob", "training", "donate_x", "max_tile_bytes")
)
def dropsample(x, key, *, prob: float = 0.0, training: bool = True,
               donate_x: bool = False, max_tile_bytes=None):
    """Pallas implementation of Dropsample.forward.

    x:   (B, C, H, W) array (any trailing shape works; only dim 0 is special)
    key: jax.random key used to draw the per-sample keep decisions
    """
    if prob == 0.0 or not training:
        return x

    B = x.shape[0]
    N = math.prod(x.shape[1:])
    itemsize = jnp.dtype(x.dtype).itemsize
    inv_keep = 1.0 / (1.0 - prob)

    # Per-sample keep scale, computed once outside the kernel (f32).
    u = jax.random.uniform(key, (B,), dtype=jnp.float32)
    scale = jnp.where(u > prob, jnp.float32(inv_keep), jnp.float32(0.0))

    # Lane-dense view: each sample becomes (rows, 128).  If N is not a
    # multiple of 128 (rare), zero-pad the flattened sample so stores stay
    # unmasked and VMEM stays bounded; slice the padding off afterwards.
    rows = pl.cdiv(N, 128)
    n_pad = rows * 128
    if n_pad == N:
        xv = x.reshape(B, rows, 128)
    else:
        xv = jnp.pad(x.reshape(B, N), ((0, 0), (0, n_pad - N))).reshape(B, rows, 128)

    if max_tile_bytes is None:
        max_tile_bytes = _default_max_tile_bytes()
    tr = _pick_row_tile(rows, itemsize, max_tile_bytes)
    grid = (B, pl.cdiv(rows, tr))

    y = pl.pallas_call(
        _dropsample_kernel,
        out_shape=jax.ShapeDtypeStruct((B, rows, 128), x.dtype),
        grid=grid,
        in_specs=[
            pl.BlockSpec(memory_space=pltpu.MemorySpace.SMEM),      # (B,) scales
            pl.BlockSpec((1, tr, 128), lambda b, t: (b, t, 0)),
        ],
        out_specs=pl.BlockSpec((1, tr, 128), lambda b, t: (b, t, 0)),
        compiler_params=pltpu.CompilerParams(
            dimension_semantics=("parallel", "parallel"),
        ),
        cost_estimate=pl.CostEstimate(
            flops=B * n_pad,
            transcendentals=0,
            bytes_accessed=2 * B * n_pad * itemsize + B * 4,
        ),
        input_output_aliases=({1: 0} if donate_x else {}),
    )(scale, xv)

    if n_pad != N:
        return y.reshape(B, n_pad)[:, :N].reshape(x.shape)
    return y.reshape(x.shape)


if __name__ == "__main__":
    root = jax.random.PRNGKey(0)
    kx, kd = jax.random.split(root)

    prob = 0.25
    inv_keep = 1.0 / (1.0 - prob)
    ok = True

    # Main lane-dense path: (2, 4, 16, 16) f32 -> N = 1024, rows = 8.
    B, C, H, W = 2, 4, 16, 16
    x = jax.random.normal(kx, (B, C, H, W), dtype=jnp.float32)
    y = jax.block_until_ready(dropsample(x, kd, prob=prob, training=True))

    # Exact reference: reproduce the wrapper's per-sample uniform draw (B = 2).
    u = jax.random.uniform(kd, (2,), dtype=jnp.float32)
    scale = jnp.where(u > prob, inv_keep, 0.0).astype(jnp.float32)
    ref = x * scale[:, None, None, None]
    ok &= bool(jnp.allclose(y, ref, rtol=1e-6, atol=1e-6))

    # Structural check: each sample either fully dropped or uniformly scaled.
    for b in range(B):
        dropped = bool(jnp.allclose(y[b], 0.0))
        kept = bool(jnp.allclose(y[b], x[b] * inv_keep, rtol=1e-5, atol=1e-5))
        ok &= (dropped or kept)

    # Identity paths: prob == 0, or eval mode.
    ok &= bool(jnp.allclose(
        jax.block_until_ready(dropsample(x, kd, prob=0.0, training=True)), x))
    ok &= bool(jnp.allclose(
        jax.block_until_ready(dropsample(x, kd, prob=prob, training=False)), x))

    # Ragged cdiv tiling: rows = 20 with a tiny tile budget -> tr = 8,
    # grid row axis = 3 with a masked last block.
    x_rg = jax.random.normal(kx, (2, 5, 4, 128), dtype=jnp.float32)
    y_rg = jax.block_until_ready(
        dropsample(x_rg, kd, prob=prob, training=True, max_tile_bytes=4096))
    ok &= bool(jnp.allclose(y_rg, x_rg * scale[:, None, None, None],
                            rtol=1e-6, atol=1e-6))

    # Padded fallback: per-sample size 3*5*7 = 105 (not a multiple of 128).
    x_pd = jax.random.normal(kx, (2, 3, 5, 7), dtype=jnp.float32)
    y_pd = jax.block_until_ready(dropsample(x_pd, kd, prob=prob, training=True))
    ok &= bool(jnp.allclose(y_pd, x_pd * scale[:, None, None, None],
                            rtol=1e-6, atol=1e-6))

    # bf16 path (native-dtype multiply, 16-row sublane alignment): structural check.
    x_bf = jax.random.normal(kx, (B, C, H, W), dtype=jnp.bfloat16)
    y_bf = jax.block_until_ready(dropsample(x_bf, kd, prob=prob, training=True))
    for b in range(B):
        yb = y_bf[b].astype(jnp.float32)
        dropped = bool(jnp.allclose(yb, 0.0))
        kept = bool(jnp.allclose(yb, x_bf[b].astype(jnp.float32) * inv_keep,
                                 rtol=2e-2, atol=2e-2))
        ok &= (dropped or kept)

    # Donated-input variant must produce identical values.
    y_don = jax.block_until_ready(dropsample(x, kd, prob=prob, training=True,
                                             donate_x=True))
    ok &= bool(jnp.allclose(y_don, ref, rtol=1e-6, atol=1e-6))

    assert ok, "Dropsample kernel produced unexpected values"
    print("KERNEL_OK")
</pallas_src>

<mosaic_0001>
module attributes {stable_mosaic.version = 11 : i64} {
  func.func @_dropsample_kernel(%arg0: i32, %arg1: i32, %arg2: memref<2xf32, #tpu.memory_space<smem>>, %arg3: memref<1x8x128xf32, #tpu.memory_space<vmem>>, %arg4: memref<1x8x128xf32, #tpu.memory_space<vmem>>) attributes {dimension_semantics = [#tpu.dimension_semantics<parallel>, #tpu.dimension_semantics<parallel>], iteration_bounds = array<i64: 2, 1>, scalar_prefetch = 0 : i64, scratch_operands = 0 : i64, tpu.core_type = #tpu.core_type<tc>, window_params = [{transform_indices = @transform_0, window_bounds = array<i64: 2>}, {transform_indices = @transform_1, window_bounds = array<i64: 1, 8, 128>}, {transform_indices = @transform_2, window_bounds = array<i64: 1, 8, 128>}]} {
    %0 = arith.index_cast %arg0 : i32 to index
    %1 = memref.load %arg2[%0] : memref<2xf32, #tpu.memory_space<smem>>
    %c0 = arith.constant 0 : index
    %c0_0 = arith.constant 0 : index
    %c0_1 = arith.constant 0 : index
    %2 = vector.load %arg3[%c0, %c0_0, %c0_1] : memref<1x8x128xf32, #tpu.memory_space<vmem>>, vector<1x8x128xf32>
    %3 = vector.broadcast %1 : f32 to vector<1x8x128xf32>
    %4 = arith.mulf %2, %3 : vector<1x8x128xf32>
    %c0_2 = arith.constant 0 : index
    %c0_3 = arith.constant 0 : index
    %c0_4 = arith.constant 0 : index
    %5 = vector.load %arg4[%c0_2, %c0_3, %c0_4] : memref<1x8x128xf32, #tpu.memory_space<vmem>>, vector<1x8x128xf32>
    tpu.vector_store %arg4[%c0_2, %c0_3, %c0_4], %4 {strides = array<i32>} : memref<1x8x128xf32, #tpu.memory_space<vmem>>, vector<1x8x128xf32>,
    return
  }
  func.func @transform_0(%arg0: i32, %arg1: i32) -> i32 {
    %c0_i32 = arith.constant 0 : i32
    %c0_i32_0 = arith.constant 0 : i32
    return %c0_i32 : i32
  }
  func.func @transform_1(%arg0: i32, %arg1: i32) -> (i32, i32, i32) {
    %c0_i32 = arith.constant 0 : i32
    %c0_i32_0 = arith.constant 0 : i32
    return %arg0, %arg1, %c0_i32 : i32, i32, i32
  }
  func.func @transform_2(%arg0: i32, %arg1: i32) -> (i32, i32, i32) {
    %c0_i32 = arith.constant 0 : i32
    %c0_i32_0 = arith.constant 0 : i32
    return %arg0, %arg1, %c0_i32 : i32, i32, i32
  }
}

</mosaic_0001>

<llo_original>
// kernel: dropsample.1
$region0: #{dropsample.1}
  #allocation0 [shape = 'u32[]', space=smem, size = 0x4, offset = 0x4, fixed_abs, tag = 'smem constant byte address 0x4 - core index']
  #allocation1 [shape = 'u32[144,128]{1,0:T(1,128)}', space=vmem, size = 0x12000, scoped, tag = 'internal scratch']
  %s0 = inlined_call_operand.vmem [shape: f32[2], index: 0, kind: input, shape index: {}]
  %s1 = inlined_call_operand.vmem [shape: f32[2,8,128], index: 1, kind: input, shape index: {}]
  %s2 = inlined_call_operand.vmem [shape: f32[2,8,128], index: 2, kind: output, shape index: {}]
  %s3 = sld [smem:[#allocation0]]
  $region45: #{dropsample.1} parent=0
    _
  %s5 = ssub.s32 1, %s3
  %s6 = scalar_select 0, %s5, %s3
  $region1: #{dropsample.1} parent=0
    #allocation2 [shape = 'u8[512]{0}', space=smem, size = 0x200, scoped, tag = 'input window, operand 0, single buffered']
    #allocation3 [shape = 's32[2]{0}', space=sflag, size = 0x8, scoped, tag = 'scoped memory for dropsample.1']
    %7 = vsyncpa [#allocation3], 0
    loop: start=0, step=1, limit=4
    $region2: #{dropsample.1} parent=1 // loop_pre_header
      _
    $region3: #{dropsample.1} parent=1 // loop_header
      %s9 = sphi 0, %s13
      %p10 = scmp.ge.s32.totalorder %s9, 4
      %s16 = sphi 0, %s28
      %s17 = sphi 0, %s24
      %s18 = sphi 0, %s16
      %s19 = sphi 0, %s17
      %s20 = sphi 0, %s18
      %s21 = sphi 0, %s19
      %s29 = sphi 0, %s29
      %s31 = sphi 0, %s29
      %s32 = sphi 0, %s31
      %s46 = sphi 0, %s32
      %s54 = sphi 0, %s56
      %s57 = sphi 0, %s54
      %s58 = sphi 0, %s57
      %s74 = sphi 0, %s58
      %s82 = sphi 0, %s84
      %s85 = sphi 0, %s82
      %s86 = sphi 0, %s85
      %s102 = sphi 0, %s86
    $region4: #{dropsample.1} parent=1 // loop_header_branch
      %12 = sbr.rel (%p10) target = $region8
    $region5: #{dropsample.1} parent=1 // loop_body
      %s14 = ssub.s32 %s9, 1
      %s15 = ssub.s32 %s9, 2
      %s22 = sadd.s32 1, %s17
      %p23 = scmp.ge.s32.totalorder %s22, 1
      %s24 = scalar_select %p23, 0, %s22
      %s25 = sadd.s32 1, %s16
      %s26 = scalar_select %p23, %s25, %s16
      %p27 = scmp.ge.s32.totalorder %s26, 2
      %s28 = scalar_select %p27, 0, %s26
      %s30 = sadd.s32 %s29, 1
      %p33 = scmp.eq.s32.totalorder %s9, 1
      %p34 = scmp.ne.s32.totalorder %s29, %s31
      %p35 = scmp.eq.s32.totalorder %s9, 0
      %p36 = por %p34, %p35
      %p37 = scmp.ne.s32.totalorder %s29, %s31
      %p38 = scmp.eq.s32.totalorder %s14, 1
      %p39 = por %p37, %p38
      %p40 = scmp.ne.s32.totalorder %s31, %s32
      %p41 = scmp.eq.s32.totalorder %s14, 0
      %p42 = por %p40, %p41
      %p43 = scmp.ne.s32.totalorder %s31, %s32
      %p44 = scmp.eq.s32.totalorder %s15, 1
      %p45 = por %p43, %p44
      %p47 = scmp.ne.s32.totalorder %s32, %s46
      %p48 = scmp.eq.s32.totalorder %s15, 0
      %p49 = por %p47, %p48
      %s50 = ssub.s32 %s16, %s28
      %s51 = ssub.s32 %s17, %s24
      %s52 = sor.u32 %s50, %s51
      %p53 = scmp.eq.s32.totalorder %s52, 0
      %s55 = sadd.s32 %s54, 1
      %s56 = scalar_select %p53, %s54, %s55
      %p59 = pneg %p53
      %p60 = scmp.eq.s32.totalorder %s9, 1
      %p61 = por %p59, %p60
      %p62 = scmp.ne.s32.totalorder %s54, %s57
      %p63 = scmp.eq.s32.totalorder %s9, 0
      %p64 = por %p62, %p63
      %p65 = scmp.ne.s32.totalorder %s54, %s57
      %p66 = scmp.eq.s32.totalorder %s14, 1
      %p67 = por %p65, %p66
      %p68 = scmp.ne.s32.totalorder %s57, %s58
      %p69 = scmp.eq.s32.totalorder %s14, 0
      %p70 = por %p68, %p69
      %p71 = scmp.ne.s32.totalorder %s57, %s58
      %p72 = scmp.eq.s32.totalorder %s15, 1
      %p73 = por %p71, %p72
      %p75 = scmp.ne.s32.totalorder %s58, %s74
      %p76 = scmp.eq.s32.totalorder %s15, 0
      %p77 = por %p75, %p76
      %s78 = ssub.s32 %s16, %s28
      %s79 = ssub.s32 %s17, %s24
      %s80 = sor.u32 %s78, %s79
      %p81 = scmp.eq.s32.totalorder %s80, 0
      %s83 = sadd.s32 %s82, 1
      %s84 = scalar_select %p81, %s82, %s83
      %p87 = pneg %p81
      %p88 = scmp.eq.s32.totalorder %s9, 1
      %p89 = por %p87, %p88
      %p90 = scmp.ne.s32.totalorder %s82, %s85
      %p91 = scmp.eq.s32.totalorder %s9, 0
      %p92 = por %p90, %p91
      %p93 = scmp.ne.s32.totalorder %s82, %s85
      %p94 = scmp.eq.s32.totalorder %s14, 1
      %p95 = por %p93, %p94
      %p96 = scmp.ne.s32.totalorder %s85, %s86
      %p97 = scmp.eq.s32.totalorder %s14, 0
      %p98 = por %p96, %p97
      %p99 = scmp.ne.s32.totalorder %s85, %s86
      %p100 = scmp.eq.s32.totalorder %s15, 1
      %p101 = por %p99, %p100
      %p103 = scmp.ne.s32.totalorder %s86, %s102
      %p104 = scmp.eq.s32.totalorder %s15, 0
      %p105 = por %p103, %p104
      %p106 = scmp.le.s32.totalorder 1, %s9
      %p107 = scmp.lt.s32.totalorder %s9, 3
      %p108 = pnand %p106, %p107
      %p109 = pneg %p108
      // Predicated region
      $region9: #{dropsample.1} parent=5 // pred_check
        _
      $region10: #{dropsample.1} parent=5 // pred_check_branch
        %111 = sbr.rel (%p108) target = $region12
      $region11: #{dropsample.1} parent=5 // pred_region
        %s112 = ssub.s32 %s9, 1
        // Predicated region
        $region13: #{dropsample.1} parent=11 // pred_check
          %p113 = pneg %p42
        $region14: #{dropsample.1} parent=11 // pred_check_branch
          %115 = sbr.rel (%p113) target = $region16
        $region15: #{dropsample.1} parent=11 // pred_region
          %s117 = ssub.s32 16, 16
          %118 = vsyncadd [#allocation3], %s117
          %s120 = sshll.u32 %s0, 4
          %s121 = int_to_ptr.vmem [resolvable:$true] %s120
          %123 = dma.vmem_to_smem %s121, 16, [#allocation2], [#allocation3]
        $region16: #{dropsample.1} parent=11 // pred_fallthru
          _
      $region12: #{dropsample.1} parent=5 // pred_fallthru
        _
      %p124 = scmp.lt.s32.totalorder %s9, 2
      // Predicated region
      $region17: #{dropsample.1} parent=5 // pred_check
        %p125 = pneg %p124
      $region18: #{dropsample.1} parent=5 // pred_check_branch
        %127 = sbr.rel (%p125) target = $region20
      $region19: #{dropsample.1} parent=5 // pred_region
        // Predicated region
        $region21: #{dropsample.1} parent=19 // pred_check
          %p128 = pneg %p64
        $region22: #{dropsample.1} parent=19 // pred_check_branch
          %130 = sbr.rel (%p128) target = $region24
        $region23: #{dropsample.1} parent=19 // pred_region
          %p131 = scmp.lt.s32.totalorder %s16, 1
          %s132 = scalar_select %p131, %s16, 1
          %p133 = scmp.lt.s32.totalorder %s17, 0
          %s134 = scalar_select %p133, %s17, 0
          %s135 = sadd.s32 %s134, %s132
          %s136 = smul.addr %s135, 8
          %s137 = scalar_lea.vmem %s1, %s136
        $region24: #{dropsample.1} parent=19 // pred_fallthru
          _
      $region20: #{dropsample.1} parent=5 // pred_fallthru
        _
      %p138 = scmp.le.s32.totalorder 1, %s9
      %p139 = scmp.lt.s32.totalorder %s9, 3
      %p140 = pnand %p138, %p139
      %p141 = pneg %p140
      // Predicated region
      $region25: #{dropsample.1} parent=5 // pred_check
        _
      $region26: #{dropsample.1} parent=5 // pred_check_branch
        %143 = sbr.rel (%p140) target = $region28
      $region27: #{dropsample.1} parent=5 // pred_region
        %s144 = ssub.s32 %s9, 1
        // Predicated region
        $region29: #{dropsample.1} parent=27 // pred_check
          %p145 = pneg %p42
        $region30: #{dropsample.1} parent=27 // pred_check_branch
          %147 = sbr.rel (%p145) target = $region32
        $region31: #{dropsample.1} parent=27 // pred_region
          %148 = dma.done [#allocation3], 16
        $region32: #{dropsample.1} parent=27 // pred_fallthru
          _
        %149 = sfence
        %p150 = pneg %p42
        %p151 = pneg %p39
        %p152 = scmp.lt.s32.totalorder %s18, 1
        %s153 = scalar_select %p152, %s18, 1
        %p154 = scmp.lt.s32.totalorder %s19, 0
        %s155 = scalar_select %p154, %s19, 0
        %s156 = sadd.s32 %s155, %s153
        %s157 = smul.addr %s156, 8
        %s158 = scalar_lea.vmem %s1, %s157
        %p159 = pneg %p70
        %p160 = pneg %p67
        %p161 = pneg %p98
        %p162 = pneg %p95
        %p163 = scmp.lt.s32.totalorder %s18, 1
        %s164 = scalar_select %p163, %s18, 1
        %p165 = scmp.lt.s32.totalorder %s19, 0
        %s166 = scalar_select %p165, %s19, 0
        %s167 = sadd.s32 %s166, %s164
        %s168 = smul.addr %s167, 8
        %s169 = scalar_lea.vmem %s2, %s168
        %p170 = scmp.lt.s32.totalorder %s18, 1
        %s171 = scalar_select %p170, %s18, 1
        %p172 = scmp.lt.s32.totalorder %s19, 0
        %s173 = scalar_select %p172, %s19, 0
        %s174 = sadd.s32 %s173, %s171
        %s175 = smul.addr %s174, 8
        %s176 = scalar_lea.vmem %s1, %s175
        %p177 = scmp.lt.s32.totalorder %s18, 1
        %s178 = scalar_select %p177, %s18, 1
        %p179 = scmp.lt.s32.totalorder %s19, 0
        %s180 = scalar_select %p179, %s19, 0
        %s181 = sadd.s32 %s180, %s178
        %s182 = smul.addr %s181, 8
        %s183 = scalar_lea.vmem %s2, %s182
        %s184 = sld [smem:[#allocation2 + %s18]]
        %v185 = vld [vmem:[%s176] sm:$0xff]
        %v186 = vstv %s184
        %v187 = vmul.f32 %v185, %v186
        %188 = vst [vmem:[%s183] sm:$0xff] %v187
        %p189 = scmp.lt.s32.totalorder %s18, 1
        %s190 = scalar_select %p189, %s18, 1
        %p191 = scmp.lt.s32.totalorder %s19, 0
        %s192 = scalar_select %p191, %s19, 0
        %s193 = sadd.s32 %s192, %s190
        %s194 = smul.addr %s193, 8
        %s195 = scalar_lea.vmem %s2, %s194
        // Predicated region
        $region33: #{dropsample.1} parent=27 // pred_check
          %p196 = pneg %p95
        $region34: #{dropsample.1} parent=27 // pred_check_branch
          %198 = sbr.rel (%p196) target = $region36
        $region35: #{dropsample.1} parent=27 // pred_region
          _
        $region36: #{dropsample.1} parent=27 // pred_fallthru
          _
      $region28: #{dropsample.1} parent=5 // pred_fallthru
        _
      %p199 = scmp.le.s32.totalorder 2, %s9
      // Predicated region
      $region37: #{dropsample.1} parent=5 // pred_check
        %p200 = pneg %p199
      $region38: #{dropsample.1} parent=5 // pred_check_branch
        %202 = sbr.rel (%p200) target = $region40
      $region39: #{dropsample.1} parent=5 // pred_region
        %s203 = ssub.s32 %s9, 2
        // Predicated region
        $region41: #{dropsample.1} parent=39 // pred_check
          %p204 = pneg %p101
        $region42: #{dropsample.1} parent=39 // pred_check_branch
          %206 = sbr.rel (%p204) target = $region44
        $region43: #{dropsample.1} parent=39 // pred_region
          %p207 = scmp.lt.s32.totalorder %s20, 1
          %s208 = scalar_select %p207, %s20, 1
          %p209 = scmp.lt.s32.totalorder %s21, 0
          %s210 = scalar_select %p209, %s21, 0
          %s211 = sadd.s32 %s210, %s208
          %s212 = smul.addr %s211, 8
          %s213 = scalar_lea.vmem %s2, %s212
        $region44: #{dropsample.1} parent=39 // pred_fallthru
          _
      $region40: #{dropsample.1} parent=5 // pred_fallthru
        _
    $region6: #{dropsample.1} parent=1 // loop_footer
      %s13 = sadd.s32 1, %s9
    $region7: #{dropsample.1} parent=1 // loop_footer_branch
      %8 = sbr.rel target = $region3
    $region8: #{dropsample.1} parent=1 // loop_exit
      _
    %214 = vsyncpa [#allocation3], 1
    %s215 = scalar_lea.sflag [#allocation3], 1
    %216 = vsyncpa %s215, 1

</llo_original>
